<compile_context>
chip_gen: v7x
topology: tpu7x:2x2x1
jax: 0.10.0
libtpu: 0.0.40
codegen_flags: <defaults>
</compile_context>

<pallas_src>
import functools
import math

import jax
import jax.numpy as jnp
from jax import lax
from jax.experimental import pallas as pl
from jax.experimental.pallas import tpu as pltpu


def _batch_loss_kernel(w_ref, y_ref, cum_ref, scal_ref, *, commission_ratio, batch):
    B = batch
    w = w_ref[...]                                        # (A, B) weights, batch on lanes
    y = y_ref[...]                                        # (A, B) price relatives

    lane = lax.broadcasted_iota(jnp.int32, (1, B), 1)

    # reward[b] = sum_a w[a,b] * y[a,b]  == torch.matmul(w, close_price)          -> (1, B)
    wy = w * y
    reward = jnp.sum(wy, axis=0, keepdims=True)

    # future_omega = w * close_price / reward  (exact divide: feeds commission -> loss)
    future_omega = wy / reward                            # (A, B)

    # pure_pc[0] = 1 ; pure_pc[b] = 1 - commission * sum_a |fo[a,b-1] - w[a,b]|
    fo_prev = pltpu.roll(future_omega, shift=1, axis=1)   # lane b holds fo[:, b-1]
    cost = jnp.sum(jnp.abs(fo_prev - w), axis=0, keepdims=True) * commission_ratio
    pure_pc = jnp.where(lane == 0, 1.0, 1.0 - cost)       # lane 0 masks the roll wrap
    rew = reward * pure_pc                                # commission-adjusted reward (1, B)

    # Single log pass, reused by loss / volatility / cumprod / MDD.
    log_rew = jnp.log(rew)

    # ---- independent cross-lane reductions (sum / sum-of-squares identities) ----
    mask1 = lane >= 1
    srw = rew - 1.0
    mlog = jnp.where(mask1, log_rew, 0.0)                 # log_rew[1:]  (diff of log cumprod)

    s_log  = jnp.sum(log_rew)
    s_srw  = jnp.sum(srw)
    s_srw2 = jnp.sum(srw * srw)
    s_ml   = jnp.sum(mlog)
    s_ml2  = jnp.sum(mlog * mlog)

    inv_b = 1.0 / B
    loss = -s_log * inv_b                                 # mean(-log(adjusted reward))

    # Sharpe ratio; torch.std -> ddof = 1
    m = s_srw * inv_b
    var1 = (s_srw2 - s_srw * m) * (1.0 / (B - 1))
    sr = (m - 2.0 / 252.0) / jnp.sqrt(var1) * math.sqrt(252.0)

    # volatility_per: np.std (ddof=0) of diff(log(cum pr products)) == log_rew[1:]
    inv_nm1 = 1.0 / (B - 1)
    lm = s_ml * inv_nm1
    lvar = (s_ml2 - s_ml * lm) * inv_nm1
    vol = jnp.sqrt(lvar) / lm * math.sqrt(252.0)

    # ---- Hillis-Steele lane scans (log2(B) pltpu.roll steps on the XLU) ----
    def lane_scan(x, op, identity):
        d = 1
        while d < B:
            shifted = pltpu.roll(x, shift=d, axis=1)
            x = op(x, jnp.where(lane >= d, shifted, identity))
            d *= 2
        return x

    cum_log = lane_scan(log_rew, jnp.add, 0.0)            # log of cumprod(rew)      (1, B)
    cmax_log = lane_scan(cum_log, jnp.maximum, -jnp.inf)  # running max in log domain
    dd = 1.0 - jnp.exp(cum_log - cmax_log)                # drawdowns, exactly 0 at highs
    mdd = jnp.max(dd)                                     # max_drawdown(adjusted reward)

    # Lane-dense cumprod row (the only VMEM writeback); exp runs off the MDD path.
    cum_ref[...] = jnp.exp(cum_log)

    # Scalars via SMEM scalar stores (no broadcast / vsel chain, no masked vst).
    scal_ref[0] = loss
    scal_ref[1] = sr
    scal_ref[2] = mdd
    scal_ref[3] = vol


@functools.partial(jax.jit, static_argnames=("commission_ratio",))
def _batch_loss_impl(w, y, pr, *, commission_ratio):
    B = w.shape[0]
    A = w.shape[-1]
    # Batch B on lanes: (A, B). Traced under jit; allow_input_fusion lets XLA fold the
    # tiny reshape/transpose into the pallas_call operands instead of a separate kernel.
    w2 = jnp.asarray(w, jnp.float32).reshape(B, A).T
    y2 = jnp.asarray(y, jnp.float32).reshape(B, A).T

    kernel = functools.partial(_batch_loss_kernel,
                               commission_ratio=float(commission_ratio), batch=B)

    vmem = pl.BlockSpec(memory_space=pltpu.MemorySpace.VMEM)
    smem = pl.BlockSpec(memory_space=pltpu.MemorySpace.SMEM)

    cum_row, scal = pl.pallas_call(
        kernel,
        out_shape=(jax.ShapeDtypeStruct((1, B), jnp.float32),   # cumprod(adjusted reward)
                   jax.ShapeDtypeStruct((8,), jnp.float32)),     # loss, SR, MDD, vol
        in_specs=[vmem, vmem],
        out_specs=(vmem, smem),
        compiler_params=pltpu.CompilerParams(allow_input_fusion=[True, True]),
    )(w2, y2)

    cumprod = cum_row[0]                                   # (B,)
    pr_f = jnp.asarray(pr, jnp.float32)
    loss_data = pr_f * cumprod                             # lossData[1:] cumulative pr products
    portfolio_value = cumprod[B - 1].reshape(1, 1)         # torch.prod(reward, 0)
    return scal[0], portfolio_value, scal[1], scal[2], loss_data, scal[3]


def batch_loss(w, y, pr, *, commission_ratio, interest_rate=0.0, gamma=0.1, beta=0.1):
    """Pallas equivalent of Batch_Loss.forward (single call, empty global state).

    interest_rate / gamma / beta are stored by the PyTorch module but unused in forward.
    Returns (loss, portfolio_value, SR, MDD, lossData, volatility_per).
    """
    del interest_rate, gamma, beta
    return _batch_loss_impl(w, y, pr, commission_ratio=float(commission_ratio))


if __name__ == "__main__":
    key = jax.random.PRNGKey(0)
    B, A = 32, 8          # the reference forward hard-codes 32 time steps in its loop
    kw, ky = jax.random.split(key)

    # Deterministic synthetic inputs: valid portfolio weights and positive price relatives.
    w = jax.nn.softmax(jax.random.normal(kw, (B, 1, A), dtype=jnp.float32), axis=-1)
    y = 1.0 + 0.01 * jax.random.normal(ky, (B, A, 1), dtype=jnp.float32)
    pr = 1.0

    outs = batch_loss(w, y, pr, commission_ratio=0.0025, interest_rate=0.02 / 250)
    outs = jax.block_until_ready(outs)

    loss, portfolio_value, SR, MDD, lossData, volatility_per = outs
    assert jnp.isfinite(loss) and jnp.all(jnp.isfinite(lossData))
    assert jnp.isfinite(SR) and jnp.isfinite(MDD) and jnp.isfinite(volatility_per)
    print("KERNEL_OK")
</pallas_src>

<mosaic_0001>
module attributes {stable_mosaic.version = 11 : i64} {
  func.func @_batch_loss_kernel(%arg0: memref<8x32xf32, #tpu.memory_space<vmem>>, %arg1: memref<8x32xf32, #tpu.memory_space<vmem>>, %arg2: memref<1x32xf32, #tpu.memory_space<vmem>>, %arg3: memref<8xf32, #tpu.memory_space<smem>>) attributes {dimension_semantics = [], scalar_prefetch = 0 : i64, scratch_operands = 0 : i64, tpu.core_type = #tpu.core_type<tc>} {
    %c0 = arith.constant 0 : index
    %c0_0 = arith.constant 0 : index
    %0 = vector.load %arg0[%c0, %c0_0] : memref<8x32xf32, #tpu.memory_space<vmem>>, vector<8x32xf32>
    %c0_1 = arith.constant 0 : index
    %c0_2 = arith.constant 0 : index
    %1 = vector.load %arg1[%c0_1, %c0_2] : memref<8x32xf32, #tpu.memory_space<vmem>>, vector<8x32xf32>
    %2 = tpu.iota {dimensions = array<i32: 1>} : vector<1x32xi32>
    %3 = arith.mulf %0, %1 : vector<8x32xf32>
    %cst = arith.constant dense<0.000000e+00> : vector<32xf32>
    %4 = vector.multi_reduction <add>, %3, %cst [0] : vector<8x32xf32> to vector<32xf32>
    %5 = vector.shape_cast %4 : vector<32xf32> to vector<1x32xf32>
    %6 = vector.broadcast %5 : vector<1x32xf32> to vector<8x32xf32>
    %7 = arith.divf %3, %6 : vector<8x32xf32>
    %c1_i32 = arith.constant 1 : i32
    %8 = tpu.dynamic_rotate %7 by %c1_i32 dim 1 : vector<8x32xf32>, i32 -> vector<8x32xf32>
    %9 = arith.subf %8, %0 : vector<8x32xf32>
    %10 = math.absf %9 : vector<8x32xf32>
    %cst_3 = arith.constant dense<0.000000e+00> : vector<32xf32>
    %11 = vector.multi_reduction <add>, %10, %cst_3 [0] : vector<8x32xf32> to vector<32xf32>
    %12 = vector.shape_cast %11 : vector<32xf32> to vector<1x32xf32>
    %cst_4 = arith.constant 2.500000e-03 : f32
    %13 = vector.broadcast %cst_4 : f32 to vector<1x32xf32>
    %14 = arith.mulf %12, %13 : vector<1x32xf32>
    %c0_i32 = arith.constant 0 : i32
    %15 = vector.broadcast %c0_i32 : i32 to vector<1x32xi32>
    %16 = arith.cmpi eq, %2, %15 : vector<1x32xi32>
    %cst_5 = arith.constant 1.000000e+00 : f32
    %17 = vector.broadcast %cst_5 : f32 to vector<1x32xf32>
    %18 = arith.subf %17, %14 : vector<1x32xf32>
    %cst_6 = arith.constant 1.000000e+00 : f32
    %19 = vector.broadcast %cst_6 : f32 to vector<1x32xf32>
    %20 = arith.select %16, %19, %18 : vector<1x32xi1>, vector<1x32xf32>
    %21 = arith.mulf %5, %20 : vector<1x32xf32>
    %22 = math.log %21 : vector<1x32xf32>
    %c1_i32_7 = arith.constant 1 : i32
    %23 = vector.broadcast %c1_i32_7 : i32 to vector<1x32xi32>
    %24 = arith.cmpi sge, %2, %23 : vector<1x32xi32>
    %cst_8 = arith.constant 1.000000e+00 : f32
    %25 = vector.broadcast %cst_8 : f32 to vector<1x32xf32>
    %26 = arith.subf %21, %25 : vector<1x32xf32>
    %cst_9 = arith.constant 0.000000e+00 : f32
    %27 = vector.broadcast %cst_9 : f32 to vector<1x32xf32>
    %28 = arith.select %24, %22, %27 : vector<1x32xi1>, vector<1x32xf32>
    %29 = vector.shape_cast %22 : vector<1x32xf32> to vector<1x1x32xf32>
    %cst_10 = arith.constant dense<0.000000e+00> : vector<1xf32>
    %30 = vector.multi_reduction <add>, %29, %cst_10 [1, 2] : vector<1x1x32xf32> to vector<1xf32>
    %31 = vector.shape_cast %30 : vector<1xf32> to vector<1x1x1xf32>
    %32 = vector.extract %31[0, 0, 0] : f32 from vector<1x1x1xf32>
    %33 = vector.shape_cast %26 : vector<1x32xf32> to vector<1x1x32xf32>
    %cst_11 = arith.constant dense<0.000000e+00> : vector<1xf32>
    %34 = vector.multi_reduction <add>, %33, %cst_11 [1, 2] : vector<1x1x32xf32> to vector<1xf32>
    %35 = vector.shape_cast %34 : vector<1xf32> to vector<1x1x1xf32>
    %36 = vector.extract %35[0, 0, 0] : f32 from vector<1x1x1xf32>
    %37 = arith.mulf %26, %26 : vector<1x32xf32>
    %38 = vector.shape_cast %37 : vector<1x32xf32> to vector<1x1x32xf32>
    %cst_12 = arith.constant dense<0.000000e+00> : vector<1xf32>
    %39 = vector.multi_reduction <add>, %38, %cst_12 [1, 2] : vector<1x1x32xf32> to vector<1xf32>
    %40 = vector.shape_cast %39 : vector<1xf32> to vector<1x1x1xf32>
    %41 = vector.extract %40[0, 0, 0] : f32 from vector<1x1x1xf32>
    %42 = vector.shape_cast %28 : vector<1x32xf32> to vector<1x1x32xf32>
    %cst_13 = arith.constant dense<0.000000e+00> : vector<1xf32>
    %43 = vector.multi_reduction <add>, %42, %cst_13 [1, 2] : vector<1x1x32xf32> to vector<1xf32>
    %44 = vector.shape_cast %43 : vector<1xf32> to vector<1x1x1xf32>
    %45 = vector.extract %44[0, 0, 0] : f32 from vector<1x1x1xf32>
    %46 = arith.mulf %28, %28 : vector<1x32xf32>
    %47 = vector.shape_cast %46 : vector<1x32xf32> to vector<1x1x32xf32>
    %cst_14 = arith.constant dense<0.000000e+00> : vector<1xf32>
    %48 = vector.multi_reduction <add>, %47, %cst_14 [1, 2] : vector<1x1x32xf32> to vector<1xf32>
    %49 = vector.shape_cast %48 : vector<1xf32> to vector<1x1x1xf32>
    %50 = vector.extract %49[0, 0, 0] : f32 from vector<1x1x1xf32>
    %cst_15 = arith.constant 0.000000e+00 : f32
    %51 = arith.subf %cst_15, %32 : f32
    %cst_16 = arith.constant 3.125000e-02 : f32
    %52 = arith.mulf %51, %cst_16 : f32
    %cst_17 = arith.constant 3.125000e-02 : f32
    %53 = arith.mulf %36, %cst_17 : f32
    %54 = arith.mulf %36, %53 : f32
    %55 = arith.subf %41, %54 : f32
    %cst_18 = arith.constant 0.0322580636 : f32
    %56 = arith.mulf %55, %cst_18 : f32
    %cst_19 = arith.constant 0.00793650839 : f32
    %57 = arith.subf %53, %cst_19 : f32
    %58 = math.sqrt %56 : f32
    %59 = arith.divf %57, %58 : f32
    %cst_20 = arith.constant 15.8745079 : f32
    %60 = arith.mulf %59, %cst_20 : f32
    %cst_21 = arith.constant 0.0322580636 : f32
    %61 = arith.mulf %45, %cst_21 : f32
    %62 = arith.mulf %45, %61 : f32
    %63 = arith.subf %50, %62 : f32
    %cst_22 = arith.constant 0.0322580636 : f32
    %64 = arith.mulf %63, %cst_22 : f32
    %65 = math.sqrt %64 : f32
    %66 = arith.divf %65, %61 : f32
    %cst_23 = arith.constant 15.8745079 : f32
    %67 = arith.mulf %66, %cst_23 : f32
    %c1_i32_24 = arith.constant 1 : i32
    %68 = tpu.dynamic_rotate %22 by %c1_i32_24 dim 1 : vector<1x32xf32>, i32 -> vector<1x32xf32>
    %c1_i32_25 = arith.constant 1 : i32
    %69 = vector.broadcast %c1_i32_25 : i32 to vector<1x32xi32>
    %70 = arith.cmpi sge, %2, %69 : vector<1x32xi32>
    %cst_26 = arith.constant 0.000000e+00 : f32
    %71 = vector.broadcast %cst_26 : f32 to vector<1x32xf32>
    %72 = arith.select %70, %68, %71 : vector<1x32xi1>, vector<1x32xf32>
    %73 = arith.addf %22, %72 : vector<1x32xf32>
    %c2_i32 = arith.constant 2 : i32
    %74 = tpu.dynamic_rotate %73 by %c2_i32 dim 1 : vector<1x32xf32>, i32 -> vector<1x32xf32>
    %c2_i32_27 = arith.constant 2 : i32
    %75 = vector.broadcast %c2_i32_27 : i32 to vector<1x32xi32>
    %76 = arith.cmpi sge, %2, %75 : vector<1x32xi32>
    %cst_28 = arith.constant 0.000000e+00 : f32
    %77 = vector.broadcast %cst_28 : f32 to vector<1x32xf32>
    %78 = arith.select %76, %74, %77 : vector<1x32xi1>, vector<1x32xf32>
    %79 = arith.addf %73, %78 : vector<1x32xf32>
    %c4_i32 = arith.constant 4 : i32
    %80 = tpu.dynamic_rotate %79 by %c4_i32 dim 1 : vector<1x32xf32>, i32 -> vector<1x32xf32>
    %c4_i32_29 = arith.constant 4 : i32
    %81 = vector.broadcast %c4_i32_29 : i32 to vector<1x32xi32>
    %82 = arith.cmpi sge, %2, %81 : vector<1x32xi32>
    %cst_30 = arith.constant 0.000000e+00 : f32
    %83 = vector.broadcast %cst_30 : f32 to vector<1x32xf32>
    %84 = arith.select %82, %80, %83 : vector<1x32xi1>, vector<1x32xf32>
    %85 = arith.addf %79, %84 : vector<1x32xf32>
    %c8_i32 = arith.constant 8 : i32
    %86 = tpu.dynamic_rotate %85 by %c8_i32 dim 1 : vector<1x32xf32>, i32 -> vector<1x32xf32>
    %c8_i32_31 = arith.constant 8 : i32
    %87 = vector.broadcast %c8_i32_31 : i32 to vector<1x32xi32>
    %88 = arith.cmpi sge, %2, %87 : vector<1x32xi32>
    %cst_32 = arith.constant 0.000000e+00 : f32
    %89 = vector.broadcast %cst_32 : f32 to vector<1x32xf32>
    %90 = arith.select %88, %86, %89 : vector<1x32xi1>, vector<1x32xf32>
    %91 = arith.addf %85, %90 : vector<1x32xf32>
    %c16_i32 = arith.constant 16 : i32
    %92 = tpu.dynamic_rotate %91 by %c16_i32 dim 1 : vector<1x32xf32>, i32 -> vector<1x32xf32>
    %c16_i32_33 = arith.constant 16 : i32
    %93 = vector.broadcast %c16_i32_33 : i32 to vector<1x32xi32>
    %94 = arith.cmpi sge, %2, %93 : vector<1x32xi32>
    %cst_34 = arith.constant 0.000000e+00 : f32
    %95 = vector.broadcast %cst_34 : f32 to vector<1x32xf32>
    %96 = arith.select %94, %92, %95 : vector<1x32xi1>, vector<1x32xf32>
    %97 = arith.addf %91, %96 : vector<1x32xf32>
    %c1_i32_35 = arith.constant 1 : i32
    %98 = tpu.dynamic_rotate %97 by %c1_i32_35 dim 1 : vector<1x32xf32>, i32 -> vector<1x32xf32>
    %c1_i32_36 = arith.constant 1 : i32
    %99 = vector.broadcast %c1_i32_36 : i32 to vector<1x32xi32>
    %100 = arith.cmpi sge, %2, %99 : vector<1x32xi32>
    %cst_37 = arith.constant 0xFF800000 : f32
    %101 = vector.broadcast %cst_37 : f32 to vector<1x32xf32>
    %102 = arith.select %100, %98, %101 : vector<1x32xi1>, vector<1x32xf32>
    %103 = arith.maximumf %97, %102 : vector<1x32xf32>
    %c2_i32_38 = arith.constant 2 : i32
    %104 = tpu.dynamic_rotate %103 by %c2_i32_38 dim 1 : vector<1x32xf32>, i32 -> vector<1x32xf32>
    %c2_i32_39 = arith.constant 2 : i32
    %105 = vector.broadcast %c2_i32_39 : i32 to vector<1x32xi32>
    %106 = arith.cmpi sge, %2, %105 : vector<1x32xi32>
    %cst_40 = arith.constant 0xFF800000 : f32
    %107 = vector.broadcast %cst_40 : f32 to vector<1x32xf32>
    %108 = arith.select %106, %104, %107 : vector<1x32xi1>, vector<1x32xf32>
    %109 = arith.maximumf %103, %108 : vector<1x32xf32>
    %c4_i32_41 = arith.constant 4 : i32
    %110 = tpu.dynamic_rotate %109 by %c4_i32_41 dim 1 : vector<1x32xf32>, i32 -> vector<1x32xf32>
    %c4_i32_42 = arith.constant 4 : i32
    %111 = vector.broadcast %c4_i32_42 : i32 to vector<1x32xi32>
    %112 = arith.cmpi sge, %2, %111 : vector<1x32xi32>
    %cst_43 = arith.constant 0xFF800000 : f32
    %113 = vector.broadcast %cst_43 : f32 to vector<1x32xf32>
    %114 = arith.select %112, %110, %113 : vector<1x32xi1>, vector<1x32xf32>
    %115 = arith.maximumf %109, %114 : vector<1x32xf32>
    %c8_i32_44 = arith.constant 8 : i32
    %116 = tpu.dynamic_rotate %115 by %c8_i32_44 dim 1 : vector<1x32xf32>, i32 -> vector<1x32xf32>
    %c8_i32_45 = arith.constant 8 : i32
    %117 = vector.broadcast %c8_i32_45 : i32 to vector<1x32xi32>
    %118 = arith.cmpi sge, %2, %117 : vector<1x32xi32>
    %cst_46 = arith.constant 0xFF800000 : f32
    %119 = vector.broadcast %cst_46 : f32 to vector<1x32xf32>
    %120 = arith.select %118, %116, %119 : vector<1x32xi1>, vector<1x32xf32>
    %121 = arith.maximumf %115, %120 : vector<1x32xf32>
    %c16_i32_47 = arith.constant 16 : i32
    %122 = tpu.dynamic_rotate %121 by %c16_i32_47 dim 1 : vector<1x32xf32>, i32 -> vector<1x32xf32>
    %c16_i32_48 = arith.constant 16 : i32
    %123 = vector.broadcast %c16_i32_48 : i32 to vector<1x32xi32>
    %124 = arith.cmpi sge, %2, %123 : vector<1x32xi32>
    %cst_49 = arith.constant 0xFF800000 : f32
    %125 = vector.broadcast %cst_49 : f32 to vector<1x32xf32>
    %126 = arith.select %124, %122, %125 : vector<1x32xi1>, vector<1x32xf32>
    %127 = arith.maximumf %121, %126 : vector<1x32xf32>
    %128 = arith.subf %97, %127 : vector<1x32xf32>
    %129 = math.exp %128 : vector<1x32xf32>
    %cst_50 = arith.constant 1.000000e+00 : f32
    %130 = vector.broadcast %cst_50 : f32 to vector<1x32xf32>
    %131 = arith.subf %130, %129 : vector<1x32xf32>
    %132 = vector.shape_cast %131 : vector<1x32xf32> to vector<1x1x32xf32>
    %cst_51 = arith.constant dense<0xFF800000> : vector<1xf32>
    %133 = vector.multi_reduction <maximumf>, %132, %cst_51 [1, 2] : vector<1x1x32xf32> to vector<1xf32>
    %134 = vector.shape_cast %133 : vector<1xf32> to vector<1x1x1xf32>
    %135 = vector.extract %134[0, 0, 0] : f32 from vector<1x1x1xf32>
    %136 = math.exp %97 : vector<1x32xf32>
    %c0_52 = arith.constant 0 : index
    %c0_53 = arith.constant 0 : index
    %137 = vector.load %arg2[%c0_52, %c0_53] : memref<1x32xf32, #tpu.memory_space<vmem>>, vector<1x32xf32>
    tpu.vector_store %arg2[%c0_52, %c0_53], %136 {strides = array<i32>} : memref<1x32xf32, #tpu.memory_space<vmem>>, vector<1x32xf32>,
    %c0_54 = arith.constant 0 : index
    %138 = memref.load %arg3[%c0_54] : memref<8xf32, #tpu.memory_space<smem>>
    memref.store %52, %arg3[%c0_54] : memref<8xf32, #tpu.memory_space<smem>>
    %c1 = arith.constant 1 : index
    %139 = memref.load %arg3[%c1] : memref<8xf32, #tpu.memory_space<smem>>
    memref.store %60, %arg3[%c1] : memref<8xf32, #tpu.memory_space<smem>>
    %c2 = arith.constant 2 : index
    %140 = memref.load %arg3[%c2] : memref<8xf32, #tpu.memory_space<smem>>
    memref.store %135, %arg3[%c2] : memref<8xf32, #tpu.memory_space<smem>>
    %c3 = arith.constant 3 : index
    %141 = memref.load %arg3[%c3] : memref<8xf32, #tpu.memory_space<smem>>
    memref.store %67, %arg3[%c3] : memref<8xf32, #tpu.memory_space<smem>>
    return
  }
}

</mosaic_0001>

<llo_original>
// kernel: _batch_loss_impl.2
$region0: #{_batch_loss_impl.2}
  #allocation0 [shape = 'u32[]', space=smem, size = 0x4, offset = 0x4, fixed_abs, tag = 'smem constant byte address 0x4 - core index']
  #allocation1 [shape = 'u32[144,128]{1,0:T(1,128)}', space=vmem, size = 0x12000, scoped, tag = 'internal scratch']
  %s0 = inlined_call_operand.vmem [shape: f32[8,32], index: 0, kind: input, shape index: {}]
  %s1 = inlined_call_operand.vmem [shape: f32[32,1,8], index: 1, kind: input, shape index: {}]
  %s2 = inlined_call_operand.vmem [shape: f32[1,32], index: 2, kind: output, shape index: {0}]
  %s3 = inlined_call_operand.vmem [shape: f32[8], index: 3, kind: output, shape index: {1}]
  %4 = xla_tuple %s2, %s3
  %s5 = sld [smem:[#allocation0]]
  $region26: #{_batch_loss_impl.2} parent=0
    _
  %s7 = ssub.s32 1, %s5
  %s8 = scalar_select 0, %s7, %s5
  $region1: #{_batch_loss_impl.2} parent=0
    #allocation2 [shape = 'u8[512]{0}', space=smem, size = 0x200, scoped, tag = 'output window, operand 1, single buffered']
    #allocation3 [shape = 's32[1]{0}', space=sflag, size = 0x4, scoped, tag = 'scoped memory for _batch_loss_impl.2']
    #allocation4 [shape = 'u8[4096]{0}', space=vmem, size = 0x1000, dematerialized = true, scoped, tag = 'FusionAdapter Buffer %fusion.1 = f32[8,32]{1,0:T(8,128)} fusion(%param_1.1), kind=kLoop, calls=%fused_computation.1.clone, metadata={op_name="jit(_batch_loss_impl)/transpose" stack_frame_id=8}']
    %9 = vsyncpa [#allocation3], 0
    // Predicated region
    $region2: #{_batch_loss_impl.2} parent=1 // pred_check
      _
    $region3: #{_batch_loss_impl.2} parent=1 // pred_check_branch
      %11 = sbr.rel (0) target = $region5
    $region4: #{_batch_loss_impl.2} parent=1 // pred_region
      _
    $region5: #{_batch_loss_impl.2} parent=1 // pred_fallthru
      _
    // Predicated region
    $region6: #{_batch_loss_impl.2} parent=1 // pred_check
      _
    $region7: #{_batch_loss_impl.2} parent=1 // pred_check_branch
      %13 = sbr.rel (0) target = $region9
    $region8: #{_batch_loss_impl.2} parent=1 // pred_region
      _
    $region9: #{_batch_loss_impl.2} parent=1 // pred_fallthru
      _
    %v14 = vld [vmem:[%s1] sm:$0xff]
    %16 = vst [vmem:[#allocation4] sm:$0xff] %v14
    %v17 = vld [vmem:[#allocation4] sm:$0xff]
    %v18 = vld [vmem:[%s0] sm:$0xff]
    %v19 = vlaneseq
    %v20 = vand.u32 %v19, 127
    %v21 = vmul.f32 %v17, %v18
    %vm22 = vcmask 261120
    %v23 = vsel %vm22, %v21, 0.0
    %v24 = vrot.slane %v23, 4
    %v25 = vadd.f32 %v23, %v24
    %v26 = vrot.slane %v25, 2
    %v27 = vadd.f32 %v25, %v26
    %v28 = vrot.slane %v27, 1
    %v29 = vadd.f32 %v27, %v28
    %v30 = vrcp.pop %v29
    %v31 = vmul.f32 %v21, %v30
    %vm32 = vcmask 1047808
    %33 = vrot.lane.b32.xlu0 %v31, 32
    %v34 = vpop.permute.xlu0 %33
    %v35 = vsel %vm32, %v34, %v31
    %36 = vrot.lane.b32.xlu0 %v35, 32
    %v37 = vpop.permute.xlu0 %36
    %v38 = vsel %vm32, %v37, %v31
    %40 = vrot.lane.b32.xlu0 %v17, 31
    %v41 = vpop.permute.xlu0 %40
    %v43 = vsub.f32 %v38, %v41
    %v44 = vand.u32 2147483647, %v43
    %vm45 = vcmask 515320
    %v46 = vsel %vm45, %v44, 0.0
    %v47 = vrot.slane %v46, 4
    %v48 = vadd.f32 %v46, %v47
    %v49 = vrot.slane %v48, 2
    %v50 = vadd.f32 %v48, %v49
    %v51 = vrot.slane %v50, 1
    %v52 = vadd.f32 %v50, %v51
    %v53 = vmul.f32 %v52, 0.0025
    %vm54 = vcmp.eq.s32.totalorder %v20, 0
    %v55 = vsub.f32 1.0, %v53
    %57 = vrot.lane.b32.xlu0 %v55, 97
    %v58 = vpop.permute.xlu0 %57
    %v60 = vsel %vm54, 1.0, %v58
    %v61 = vmul.f32 %v29, %v60
    %v62 = vlog2.pop %v61
    %v63 = vmul.f32 %v62, 0.6931472
    %vm64 = vcmp.ge.s32.totalorder %v20, 1
    %v65 = vsub.f32 %v61, 1.0
    %v66 = vsel %vm64, %v63, 0.0
    %vm67 = vcmask 253952
    %v68 = vsel %vm67, %v63, 0.0
    %69 = vadd.xlane.f32.xlu0 %v68
    %v70 = vpop.xlane.xlu0 %69
    %v71 = vrot.slane %v70, 4
    %v72 = vadd.f32 %v70, %v71
    %v73 = vrot.slane %v72, 2
    %v74 = vadd.f32 %v72, %v73
    %v75 = vrot.slane %v74, 1
    %v76 = vadd.f32 %v74, %v75
    %s77 = vtos %v76
    %v78 = vsel %vm67, %v65, 0.0
    %79 = vadd.xlane.f32.xlu0 %v78
    %v80 = vpop.xlane.xlu0 %79
    %v81 = vrot.slane %v80, 4
    %v82 = vadd.f32 %v80, %v81
    %v83 = vrot.slane %v82, 2
    %v84 = vadd.f32 %v82, %v83
    %v85 = vrot.slane %v84, 1
    %v86 = vadd.f32 %v84, %v85
    %s87 = vtos %v86
    %v88 = vmul.f32 %v65, %v65
    %v89 = vsel %vm67, %v88, 0.0
    %90 = vadd.xlane.f32.xlu0 %v89
    %v91 = vpop.xlane.xlu0 %90
    %v92 = vrot.slane %v91, 4
    %v93 = vadd.f32 %v91, %v92
    %v94 = vrot.slane %v93, 2
    %v95 = vadd.f32 %v93, %v94
    %v96 = vrot.slane %v95, 1
    %v97 = vadd.f32 %v95, %v96
    %s98 = vtos %v97
    %v99 = vsel %vm67, %v66, 0.0
    %100 = vadd.xlane.f32.xlu0 %v99
    %v101 = vpop.xlane.xlu0 %100
    %v102 = vrot.slane %v101, 4
    %v103 = vadd.f32 %v101, %v102
    %v104 = vrot.slane %v103, 2
    %v105 = vadd.f32 %v103, %v104
    %v106 = vrot.slane %v105, 1
    %v107 = vadd.f32 %v105, %v106
    %s108 = vtos %v107
    %v109 = vmul.f32 %v66, %v66
    %v110 = vsel %vm67, %v109, 0.0
    %111 = vadd.xlane.f32.xlu0 %v110
    %v112 = vpop.xlane.xlu0 %111
    %v113 = vrot.slane %v112, 4
    %v114 = vadd.f32 %v112, %v113
    %v115 = vrot.slane %v114, 2
    %v116 = vadd.f32 %v114, %v115
    %v117 = vrot.slane %v116, 1
    %v118 = vadd.f32 %v116, %v117
    %s119 = vtos %v118
    %s120 = ssub.f32 0.0, %s77
    %s121 = smul.f32 %s120, 0.03125
    %s122 = smul.f32 %s87, 0.03125
    %s123 = smul.f32 %s87, %s122
    %s124 = ssub.f32 %s98, %s123
    %s125 = smul.f32 %s124, 0.032258064
    %s126 = ssub.f32 %s122, 0.007936508
    %v127 = vstv %s125
    %v128 = vrsqrt.pop %v127
    %v129 = vmul.f32 %v127, %v128
    %vm130 = vcmp.eq.f32.partialorder %v127, inf
    %v131 = vsel %vm130, %v127, %v129
    %vm132 = vcmp.eq.f32.partialorder %v127, 0.0
    %v133 = vand.u32 %v127, 2147483648
    %v134 = vsel %vm132, %v133, %v131
    %s135 = vtos %v134
    %v136 = vstv %s135
    %v137 = vrcp.pop %v136
    %s138 = vtos %v137
    %s139 = smul.f32 %s126, %s138
    %s140 = smul.f32 %s139, 15.874508
    %s141 = smul.f32 %s108, 0.032258064
    %s142 = smul.f32 %s108, %s141
    %s143 = ssub.f32 %s119, %s142
    %s144 = smul.f32 %s143, 0.032258064
    %v145 = vstv %s144
    %v146 = vrsqrt.pop %v145
    %v147 = vmul.f32 %v145, %v146
    %vm148 = vcmp.eq.f32.partialorder %v145, inf
    %v149 = vsel %vm148, %v145, %v147
    %vm150 = vcmp.eq.f32.partialorder %v145, 0.0
    %v151 = vand.u32 %v145, 2147483648
    %v152 = vsel %vm150, %v151, %v149
    %s153 = vtos %v152
    %v154 = vstv %s141
    %v155 = vrcp.pop %v154
    %s156 = vtos %v155
    %s157 = smul.f32 %s153, %s156
    %s158 = smul.f32 %s157, 15.874508
    %159 = vrot.lane.b32.xlu0 %v63, 32
    %v160 = vpop.permute.xlu0 %159
    %v161 = vsel %vm32, %v160, %v63
    %162 = vrot.lane.b32.xlu0 %v161, 32
    %v163 = vpop.permute.xlu0 %162
    %v164 = vsel %vm32, %v163, %v63
    %166 = vrot.lane.b32.xlu0 %v164, 97
    %v167 = vpop.permute.xlu0 %166
    %v169 = vsel %vm64, %v167, 0.0
    %v170 = vadd.f32 %v63, %v169
    %171 = vrot.lane.b32.xlu0 %v170, 32
    %v172 = vpop.permute.xlu0 %171
    %v173 = vsel %vm32, %v172, %v170
    %174 = vrot.lane.b32.xlu0 %v173, 32
    %v175 = vpop.permute.xlu0 %174
    %v176 = vsel %vm32, %v175, %v170
    %vm177 = vcmp.ge.s32.totalorder %v20, 2
    %179 = vrot.lane.b32.xlu0 %v176, 98
    %v180 = vpop.permute.xlu0 %179
    %v182 = vsel %vm177, %v180, 0.0
    %v183 = vadd.f32 %v170, %v182
    %184 = vrot.lane.b32.xlu0 %v183, 32
    %v185 = vpop.permute.xlu0 %184
    %v186 = vsel %vm32, %v185, %v183
    %187 = vrot.lane.b32.xlu0 %v186, 32
    %v188 = vpop.permute.xlu0 %187
    %v189 = vsel %vm32, %v188, %v183
    %vm190 = vcmp.ge.s32.totalorder %v20, 4
    %192 = vrot.lane.b32.xlu0 %v189, 100
    %v193 = vpop.permute.xlu0 %192
    %v195 = vsel %vm190, %v193, 0.0
    %v196 = vadd.f32 %v183, %v195
    %197 = vrot.lane.b32.xlu0 %v196, 32
    %v198 = vpop.permute.xlu0 %197
    %v199 = vsel %vm32, %v198, %v196
    %200 = vrot.lane.b32.xlu0 %v199, 32
    %v201 = vpop.permute.xlu0 %200
    %v202 = vsel %vm32, %v201, %v196
    %vm203 = vcmp.ge.s32.totalorder %v20, 8
    %205 = vrot.lane.b32.xlu0 %v202, 104
    %v206 = vpop.permute.xlu0 %205
    %v208 = vsel %vm203, %v206, 0.0
    %v209 = vadd.f32 %v196, %v208
    %210 = vrot.lane.b32.xlu0 %v209, 32
    %v211 = vpop.permute.xlu0 %210
    %v212 = vsel %vm32, %v211, %v209
    %213 = vrot.lane.b32.xlu0 %v212, 32
    %v214 = vpop.permute.xlu0 %213
    %v215 = vsel %vm32, %v214, %v209
    %vm216 = vcmp.ge.s32.totalorder %v20, 16
    %218 = vrot.lane.b32.xlu0 %v215, 112
    %v219 = vpop.permute.xlu0 %218
    %v221 = vsel %vm216, %v219, 0.0
    %v222 = vadd.f32 %v209, %v221
    %223 = vrot.lane.b32.xlu0 %v222, 32
    %v224 = vpop.permute.xlu0 %223
    %v225 = vsel %vm32, %v224, %v222
    %226 = vrot.lane.b32.xlu0 %v225, 32
    %v227 = vpop.permute.xlu0 %226
    %v228 = vsel %vm32, %v227, %v222
    %230 = vrot.lane.b32.xlu0 %v228, 97
    %v231 = vpop.permute.xlu0 %230
    %v233 = vsel %vm64, %v231, -inf
    %v234 = vmax.f32 %v222, %v233
    %235 = vrot.lane.b32.xlu0 %v234, 32
    %v236 = vpop.permute.xlu0 %235
    %v237 = vsel %vm32, %v236, %v234
    %238 = vrot.lane.b32.xlu0 %v237, 32
    %v239 = vpop.permute.xlu0 %238
    %v240 = vsel %vm32, %v239, %v234
    %242 = vrot.lane.b32.xlu0 %v240, 98
    %v243 = vpop.permute.xlu0 %242
    %v245 = vsel %vm177, %v243, -inf
    %v246 = vmax.f32 %v234, %v245
    %247 = vrot.lane.b32.xlu0 %v246, 32
    %v248 = vpop.permute.xlu0 %247
    %v249 = vsel %vm32, %v248, %v246
    %250 = vrot.lane.b32.xlu0 %v249, 32
    %v251 = vpop.permute.xlu0 %250
    %v252 = vsel %vm32, %v251, %v246
    %254 = vrot.lane.b32.xlu0 %v252, 100
    %v255 = vpop.permute.xlu0 %254
    %v257 = vsel %vm190, %v255, -inf
    %v258 = vmax.f32 %v246, %v257
    %259 = vrot.lane.b32.xlu0 %v258, 32
    %v260 = vpop.permute.xlu0 %259
    %v261 = vsel %vm32, %v260, %v258
    %262 = vrot.lane.b32.xlu0 %v261, 32
    %v263 = vpop.permute.xlu0 %262
    %v264 = vsel %vm32, %v263, %v258
    %266 = vrot.lane.b32.xlu0 %v264, 104
    %v267 = vpop.permute.xlu0 %266
    %v269 = vsel %vm203, %v267, -inf
    %v270 = vmax.f32 %v258, %v269
    %271 = vrot.lane.b32.xlu0 %v270, 32
    %v272 = vpop.permute.xlu0 %271
    %v273 = vsel %vm32, %v272, %v270
    %274 = vrot.lane.b32.xlu0 %v273, 32
    %v275 = vpop.permute.xlu0 %274
    %v276 = vsel %vm32, %v275, %v270
    %278 = vrot.lane.b32.xlu0 %v276, 112
    %v279 = vpop.permute.xlu0 %278
    %v281 = vsel %vm216, %v279, -inf
    %v282 = vmax.f32 %v270, %v281
    %v283 = vsub.f32 %v222, %v282
    %v284 = vmul.f32 %v283, 1.442695
    %v285 = vpow.pop %v284
    %v286 = vsub.f32 1.0, %v285
    %v287 = vsel %vm67, %v286, -inf
    %288 = vmax.xlane.f32.xlu0 %v287
    %v289 = vpop.xlane.xlu0 %288
    %v290 = vrot.slane %v289, 4
    %v291 = vmax.f32 %v289, %v290
    %v292 = vrot.slane %v291, 2
    %v293 = vmax.f32 %v291, %v292
    %v294 = vrot.slane %v293, 1
    %v295 = vmax.f32 %v293, %v294
    %s296 = vtos %v295
    %v297 = vmul.f32 %v222, 1.442695
    %v298 = vpow.pop %v297
    %299 = vst.msk [vmem:[%s2] sm:$0x1] %vm67, %v298
    %s300 = scalar_lea.smem [#allocation2], 0
    %301 = sst [smem:[%s300]] %s121
    %s302 = scalar_lea.smem [#allocation2], 1
    %303 = sst [smem:[%s302]] %s140
    %s304 = scalar_lea.smem [#allocation2], 2
    %305 = sst [smem:[%s304]] %s296
    %s306 = scalar_lea.smem [#allocation2], 3
    %307 = sst [smem:[%s306]] %s158
    // Predicated region
    $region10: #{_batch_loss_impl.2} parent=1 // pred_check
      _
    $region11: #{_batch_loss_impl.2} parent=1 // pred_check_branch
      %309 = sbr.rel (0) target = $region13
    $region12: #{_batch_loss_impl.2} parent=1 // pred_region
      _
    $region13: #{_batch_loss_impl.2} parent=1 // pred_fallthru
      _
    // Predicated region
    $region14: #{_batch_loss_impl.2} parent=1 // pred_check
      _
    $region15: #{_batch_loss_impl.2} parent=1 // pred_check_branch
      %311 = sbr.rel (0) target = $region17
    $region16: #{_batch_loss_impl.2} parent=1 // pred_region
      %s313 = ssub.s32 16, 16
      %314 = vsyncadd [#allocation3], %s313
      %s316 = sshll.u32 %s3, 4
      %s317 = int_to_ptr.vmem [resolvable:$true] %s316
      %319 = dma.smem_to_vmem [#allocation2], 16, %s317, [#allocation3]
    $region17: #{_batch_loss_impl.2} parent=1 // pred_fallthru
      _
    // Predicated region
    $region18: #{_batch_loss_impl.2} parent=1 // pred_check
      _
    $region19: #{_batch_loss_impl.2} parent=1 // pred_check_branch
      %321 = sbr.rel (0) target = $region21
    $region20: #{_batch_loss_impl.2} parent=1 // pred_region
      _
    $region21: #{_batch_loss_impl.2} parent=1 // pred_fallthru
      _
    // Predicated region
    $region22: #{_batch_loss_impl.2} parent=1 // pred_check
      _
    $region23: #{_batch_loss_impl.2} parent=1 // pred_check_branch
      %323 = sbr.rel (0) target = $region25
    $region24: #{_batch_loss_impl.2} parent=1 // pred_region
      %324 = dma.done [#allocation3], 16
    $region25: #{_batch_loss_impl.2} parent=1 // pred_fallthru
      _
    %325 = sfence
    %326 = vsyncpa [#allocation3], 1

</llo_original>
